<compile_context>
chip_gen: v7x
topology: tpu7x:2x2x1
jax: 0.10.0
libtpu: 0.0.40
codegen_flags: <defaults>
</compile_context>

<pallas_src>
import functools

import jax
import jax.numpy as jnp
import numpy as np
from jax.experimental import pallas as pl
from jax.experimental.pallas import tpu as pltpu

NUM_HEADS = 4


def _ctx_attn_kernel(q_ref, kv_ref, wqbil_ref, kvrhs_ref, hsum_ref, bias_ref,
                     out_ref, *, bt, n, c, hc, scale):
    f32 = jnp.float32

    # ---- per-batch query mean (the mean over queries commutes with the linear
    #      projection and the bilinear map), computed with a sublane reduce ----
    q3 = q_ref[...].astype(f32).reshape(bt, n, c)
    q_mean = jnp.sum(q3, axis=1) * (1.0 / n)                            # (bt, C)

    # Bilinear-projected mean query: tiny bf16 MXU matmul on (bt, C); the
    # 1/sqrt(head_dim) scale is applied here in f32 (kept exact).
    bil = jnp.dot(q_mean.astype(wqbil_ref.dtype), wqbil_ref[...],
                  preferred_element_type=f32) * scale                   # (bt, C)

    # ---- fused k/v projection: one bf16 MXU pass through the block-diagonal
    #      RHS.  Lane layout of the result: [ vt (HC lanes) | kp (C lanes) ] ----
    kvp = jnp.dot(kv_ref[...], kvrhs_ref[...],
                  preferred_element_type=f32)                           # (bt*n, HC+C)
    vt = kvp[:, :hc]                                                    # (bt*n, HC)
    kp = kvp[:, hc:]                                                    # (bt*n, C)

    # ---- per-head scores (replicated across each head's C-lane block via the
    #      0/1 head-sum matrix; it is exact in bf16) ----
    prod = (kp.reshape(bt, n, c) * bil[:, None, :]).reshape(bt * n, c)
    s = jnp.dot(prod.astype(hsum_ref.dtype), hsum_ref[...],
                preferred_element_type=f32)                             # (bt*n, HC)

    # ---- softmax over keys within each batch element (f32 VPU/EUP) ----
    s3 = s.reshape(bt, n, hc)
    m = jnp.max(s3, axis=1, keepdims=True)
    e = jnp.exp(s3 - m)
    denom = jnp.sum(e, axis=1, keepdims=True)
    # NOTE: approx reciprocal (~1e-3 rel err) is fine here; use approx=False
    # if bit-level parity with the PyTorch module matters.
    attn = e * pl.reciprocal(denom, approx=True)                        # (bt, n, HC)

    # ---- attention-weighted value sum + projection bias ----
    vt3 = vt.reshape(bt, n, hc)
    out = jnp.sum(attn * vt3, axis=1) + bias_ref[...]                   # (bt, HC)
    out_ref[...] = out[None].astype(out_ref.dtype)                      # (1, bt, HC)


def _pick_block_batch(B, N, cap_rows=512):
    """Number of batch elements processed per grid step.

    Perf-review constraints:
      * bt * N <= ~512 rows so the live f32 temporaries stay near the vreg file,
      * grid length >= 2 whenever B >= 2 so the 'parallel' batch axis can be
        sharded across both v7x TensorCores,
      * prefer bt a multiple of 8 (unmasked sublane stores on the output tile).
    Falls back to bt=1 when N alone exceeds the row cap (perf, not correctness).
    """
    limit = B // 2 if B >= 2 else 1
    cands = [cand for cand in range(1, B + 1)
             if B % cand == 0 and cand <= limit and (cand * N <= cap_rows or cand == 1)]
    mult8 = [cand for cand in cands if cand % 8 == 0]
    return max(mult8) if mult8 else max(cands)


def fold_context_attention_params(params, num_heads=NUM_HEADS,
                                  compute_dtype=jnp.bfloat16):
    """Host-side weight folding; call ONCE per parameter set and reuse.

    Every transpose, head block-diagonalization, linear-map folding and lane
    tiling happens here so the kernel body is only full-width 2-D MXU matmuls,
    a VPU softmax and sublane reductions.
    """
    f32 = jnp.float32
    wq = params["wq"].astype(f32)
    wk = params["wk"].astype(f32)
    wv = params["wv"].astype(f32)
    wb = params["wb"].astype(f32)
    wp = params["wp"].astype(f32)
    bp = params["bp"].astype(f32)

    C = wq.shape[0]
    assert C % num_heads == 0, "dim must be divisible by num_heads"
    D = C // num_heads
    HC = num_heads * C

    # wq.T @ blockdiag_H(wb.T): per-head bilinear map applied to the mean query.
    wq_bil = wq.T @ jnp.kron(jnp.eye(num_heads, dtype=f32), wb.T)        # (C, C)
    # Value path folded through the output projection, lane-tiled per head.
    # TODO(synk): for large C, skip the H-fold lane tiling and broadcast the
    # untiled (C-lane) vp across head blocks at the attn*vt multiply instead.
    wvpt = jnp.tile(wv.T @ wp.T, (1, num_heads))                         # (C, HC)
    wkT = wk.T                                                           # (C, C)
    # Fused block-diagonal RHS so that [k | v] @ kv_rhs = [vt | kp]
    # (vt first -> its lane block starts at a 128-aligned boundary).
    kv_rhs = jnp.concatenate([
        jnp.concatenate([jnp.zeros((C, HC), f32), wkT], axis=1),   # k rows
        jnp.concatenate([wvpt, jnp.zeros((C, C), f32)], axis=1),   # v rows
    ], axis=0)                                                           # (2C, HC+C)
    # Head-sum / per-head replicate matrix (entries 0/1, exact in bf16).
    hsum = jnp.kron(jnp.eye(num_heads, dtype=f32),
                    jnp.ones((D, C), dtype=f32))                         # (C, HC)
    bias = jnp.tile(bp, num_heads)[None, :]                              # (1, HC) f32

    return {
        "wq_bil": wq_bil.astype(compute_dtype),
        "kv_rhs": kv_rhs.astype(compute_dtype),
        "hsum": hsum.astype(compute_dtype),
        "bias": bias,                        # kept f32 (added after the f32 reduce)
    }


def context_attention(q, k, v, folded, num_heads=NUM_HEADS):
    """Pallas implementation of Context_Attention.forward (mask=None path).

    `folded` comes from fold_context_attention_params (computed once per
    parameter set).
    """
    # TODO(synk): optional `mask` argument (masked_fill with -1e9) not implemented;
    # the module's default mask=None path is reproduced here.
    B, N, C = q.shape
    assert C % num_heads == 0, "dim must be divisible by num_heads"
    assert N % 8 == 0, "kernel assumes the token count is a multiple of 8"
    # TODO(synk): pad + mask the key axis for token counts not divisible by 8.
    D = C // num_heads
    HC = num_heads * C
    scale = D ** (-0.5)

    bt = _pick_block_batch(B, N)
    grid = (B // bt,)

    cdt = folded["kv_rhs"].dtype           # bf16 MXU inputs (f32 accumulation)
    q2 = q.reshape(B * N, C).astype(cdt)
    kv2 = jnp.concatenate([k.reshape(B * N, C), v.reshape(B * N, C)],
                          axis=-1).astype(cdt)                            # (B*N, 2C)

    kernel = functools.partial(_ctx_attn_kernel, bt=bt, n=N, c=C, hc=HC,
                               scale=scale)

    q_spec = pl.BlockSpec((bt * N, C), lambda b: (b, 0))
    kv_spec = pl.BlockSpec((bt * N, 2 * C), lambda b: (b, 0))

    def const2d(shape):
        return pl.BlockSpec(shape, lambda b: (0, 0))

    out3 = pl.pallas_call(
        kernel,
        out_shape=jax.ShapeDtypeStruct((B // bt, bt, HC), q.dtype),
        grid=grid,
        in_specs=[
            q_spec,                       # queries (only the per-batch mean is used)
            kv_spec,                      # [k | v] fused along lanes
            const2d((C, C)),              # wq.T @ blockdiag(wb.T)
            const2d((2 * C, HC + C)),     # fused block-diag k/v projection RHS
            const2d((C, HC)),             # head-sum / per-head replicate matrix
            const2d((1, HC)),             # proj bias, lane-tiled per head
        ],
        out_specs=pl.BlockSpec((1, bt, HC), lambda b: (b, 0, 0)),
        compiler_params=pltpu.CompilerParams(
            dimension_semantics=("parallel",)),
    )(q2, kv2, folded["wq_bil"], folded["kv_rhs"], folded["hsum"],
      folded["bias"])

    out = out3.reshape(B, num_heads, C)
    if num_heads == 1:  # torch's x.squeeze(1) only squeezes when size-1
        out = out[:, 0]
    return out


def reference(q, k, v, params, num_heads=NUM_HEADS):
    """Pure-JAX f32 replica of the PyTorch forward, used for verification."""
    B, N, C = q.shape
    D = C // num_heads
    scale = D ** (-0.5)
    qp = q @ params["wq"].T
    kp = k @ params["wk"].T
    vp = v @ params["wv"].T
    qh = qp.reshape(B, N, num_heads, D).transpose(0, 2, 1, 3)   # (B,H,N,D)
    kh = kp.reshape(B, N, num_heads, D).transpose(0, 2, 3, 1)   # (B,H,D,N)
    vh = vp.reshape(B, N, num_heads, D).transpose(0, 2, 1, 3)   # (B,H,N,D)
    attn = jnp.einsum("bhnd,de->bhne", qh, params["wb"].T) @ kh * scale  # (B,H,N,N)
    attn = attn.mean(axis=-2)[:, None]                           # (B,1,H,N)
    attn = jax.nn.softmax(attn, axis=-1)
    x = jnp.matmul(attn, vh)                                     # (B,H,H,D)
    x = x.transpose(0, 2, 1, 3).reshape(B, -1, C)                # (B,H,C)
    x = x @ params["wp"].T + params["bp"]
    if num_heads == 1:
        x = x[:, 0]
    return x


if __name__ == "__main__":
    B, N, C = 2, 8, 32
    H = NUM_HEADS
    D = C // H

    key = jax.random.PRNGKey(0)
    ks = jax.random.split(key, 9)
    q = jax.random.normal(ks[0], (B, N, C), jnp.float32)
    k = jax.random.normal(ks[1], (B, N, C), jnp.float32)
    v = jax.random.normal(ks[2], (B, N, C), jnp.float32)

    w_scale = 0.1  # deterministic synthetic weights (module shapes from __init__)
    params = {
        "wq": jax.random.normal(ks[3], (C, C), jnp.float32) * w_scale,
        "wk": jax.random.normal(ks[4], (C, C), jnp.float32) * w_scale,
        "wv": jax.random.normal(ks[5], (C, C), jnp.float32) * w_scale,
        "wb": jax.random.normal(ks[6], (D, D), jnp.float32) * w_scale,
        "wp": jax.random.normal(ks[7], (C, C), jnp.float32) * w_scale,
        "bp": jax.random.normal(ks[8], (C,), jnp.float32) * w_scale,
    }

    # Weight folding hoisted out of the forward call (one-time, per param set).
    folded = fold_context_attention_params(params, num_heads=H)
    attn_fn = jax.jit(functools.partial(context_attention, num_heads=H))

    out = attn_fn(q, k, v, folded)
    out = jax.block_until_ready(out)

    ref = reference(q, k, v, params, num_heads=H)
    assert out.shape == (B, H, C), out.shape
    # bf16 MXU path + approx reciprocal -> compare at bf16-level tolerance.
    np.testing.assert_allclose(np.asarray(out), np.asarray(ref),
                               rtol=2e-2, atol=2e-2)
    print("KERNEL_OK")
</pallas_src>

<mosaic_0001>
module attributes {stable_mosaic.version = 11 : i64} {
  func.func @_ctx_attn_kernel(%arg0: i32, %arg1: memref<8x32xbf16, #tpu.memory_space<vmem>>, %arg2: memref<8x64xbf16, #tpu.memory_space<vmem>>, %arg3: memref<32x32xbf16, #tpu.memory_space<vmem>>, %arg4: memref<64x160xbf16, #tpu.memory_space<vmem>>, %arg5: memref<32x128xbf16, #tpu.memory_space<vmem>>, %arg6: memref<1x128xf32, #tpu.memory_space<vmem>>, %arg7: memref<1x1x128xf32, #tpu.memory_space<vmem>>) attributes {dimension_semantics = [#tpu.dimension_semantics<parallel>], iteration_bounds = array<i64: 2>, scalar_prefetch = 0 : i64, scratch_operands = 0 : i64, tpu.core_type = #tpu.core_type<tc>, window_params = [{transform_indices = @transform_0, window_bounds = array<i64: 8, 32>}, {transform_indices = @transform_1, window_bounds = array<i64: 8, 64>}, {pipeline_mode = #tpu.pipeline_mode<synchronous>, transform_indices = @transform_2, window_bounds = array<i64: 32, 32>}, {pipeline_mode = #tpu.pipeline_mode<synchronous>, transform_indices = @transform_3, window_bounds = array<i64: 64, 160>}, {pipeline_mode = #tpu.pipeline_mode<synchronous>, transform_indices = @transform_4, window_bounds = array<i64: 32, 128>}, {pipeline_mode = #tpu.pipeline_mode<synchronous>, transform_indices = @transform_5, window_bounds = array<i64: 1, 128>}, {transform_indices = @transform_6, window_bounds = array<i64: 1, 1, 128>}]} {
    %c0 = arith.constant 0 : index
    %c0_0 = arith.constant 0 : index
    %0 = vector.load %arg1[%c0, %c0_0] : memref<8x32xbf16, #tpu.memory_space<vmem>>, vector<8x32xbf16>
    %1 = arith.extf %0 : vector<8x32xbf16> to vector<8x32xf32>
    %2 = vector.shape_cast %1 : vector<8x32xf32> to vector<1x8x32xf32>
    %cst = arith.constant dense<0.000000e+00> : vector<1x32xf32>
    %3 = vector.multi_reduction <add>, %2, %cst [1] : vector<1x8x32xf32> to vector<1x32xf32>
    %cst_1 = arith.constant 1.250000e-01 : f32
    %4 = vector.broadcast %cst_1 : f32 to vector<1x32xf32>
    %5 = arith.mulf %3, %4 : vector<1x32xf32>
    %6 = arith.truncf %5 : vector<1x32xf32> to vector<1x32xbf16>
    %c0_2 = arith.constant 0 : index
    %c0_3 = arith.constant 0 : index
    %7 = vector.load %arg3[%c0_2, %c0_3] : memref<32x32xbf16, #tpu.memory_space<vmem>>, vector<32x32xbf16>
    %cst_4 = arith.constant dense<0.000000e+00> : vector<1x32xf32>
    %8 = tpu.matmul %6, %7, %cst_4 {dimension_numbers = #tpu.dot_dimension_numbers<[1], [0], [0], [1], [0, 0, 1, 1], [], []>} : vector<1x32xbf16>, vector<32x32xbf16>, vector<1x32xf32> -> vector<1x32xf32>
    %cst_5 = arith.constant 0.353553385 : f32
    %9 = vector.broadcast %cst_5 : f32 to vector<1x32xf32>
    %10 = arith.mulf %8, %9 : vector<1x32xf32>
    %c0_6 = arith.constant 0 : index
    %c0_7 = arith.constant 0 : index
    %11 = vector.load %arg2[%c0_6, %c0_7] : memref<8x64xbf16, #tpu.memory_space<vmem>>, vector<8x64xbf16>
    %c0_8 = arith.constant 0 : index
    %c0_9 = arith.constant 0 : index
    %12 = vector.load %arg4[%c0_8, %c0_9] : memref<64x160xbf16, #tpu.memory_space<vmem>>, vector<64x160xbf16>
    %cst_10 = arith.constant dense<0.000000e+00> : vector<8x160xf32>
    %13 = tpu.matmul %11, %12, %cst_10 {dimension_numbers = #tpu.dot_dimension_numbers<[1], [0], [0], [1], [0, 0, 1, 1], [], []>} : vector<8x64xbf16>, vector<64x160xbf16>, vector<8x160xf32> -> vector<8x160xf32>
    %14 = vector.extract_strided_slice %13 {offsets = [0, 0], sizes = [8, 128], strides = [1, 1]} : vector<8x160xf32> to vector<8x128xf32>
    %15 = vector.extract_strided_slice %13 {offsets = [0, 128], sizes = [8, 32], strides = [1, 1]} : vector<8x160xf32> to vector<8x32xf32>
    %16 = vector.shape_cast %15 : vector<8x32xf32> to vector<1x8x32xf32>
    %17 = vector.shape_cast %10 : vector<1x32xf32> to vector<1x1x32xf32>
    %18 = vector.broadcast %17 : vector<1x1x32xf32> to vector<1x8x32xf32>
    %19 = arith.mulf %16, %18 : vector<1x8x32xf32>
    %20 = vector.shape_cast %19 : vector<1x8x32xf32> to vector<8x32xf32>
    %21 = arith.truncf %20 : vector<8x32xf32> to vector<8x32xbf16>
    %c0_11 = arith.constant 0 : index
    %c0_12 = arith.constant 0 : index
    %22 = vector.load %arg5[%c0_11, %c0_12] : memref<32x128xbf16, #tpu.memory_space<vmem>>, vector<32x128xbf16>
    %cst_13 = arith.constant dense<0.000000e+00> : vector<8x128xf32>
    %23 = tpu.matmul %21, %22, %cst_13 {dimension_numbers = #tpu.dot_dimension_numbers<[1], [0], [0], [1], [0, 0, 1, 1], [], []>} : vector<8x32xbf16>, vector<32x128xbf16>, vector<8x128xf32> -> vector<8x128xf32>
    %24 = vector.shape_cast %23 : vector<8x128xf32> to vector<1x8x128xf32>
    %cst_14 = arith.constant dense<0xFF800000> : vector<1x128xf32>
    %25 = vector.multi_reduction <maximumf>, %24, %cst_14 [1] : vector<1x8x128xf32> to vector<1x128xf32>
    %26 = vector.shape_cast %25 : vector<1x128xf32> to vector<1x1x128xf32>
    %27 = vector.broadcast %26 : vector<1x1x128xf32> to vector<1x8x128xf32>
    %28 = arith.subf %24, %27 : vector<1x8x128xf32>
    %29 = math.exp %28 : vector<1x8x128xf32>
    %cst_15 = arith.constant dense<0.000000e+00> : vector<1x128xf32>
    %30 = vector.multi_reduction <add>, %29, %cst_15 [1] : vector<1x8x128xf32> to vector<1x128xf32>
    %31 = vector.shape_cast %30 : vector<1x128xf32> to vector<1x1x128xf32>
    %32 = tpu.reciprocal %31 {approx = true} : vector<1x1x128xf32> -> vector<1x1x128xf32>
    %33 = vector.broadcast %32 : vector<1x1x128xf32> to vector<1x8x128xf32>
    %34 = arith.mulf %29, %33 : vector<1x8x128xf32>
    %35 = vector.shape_cast %14 : vector<8x128xf32> to vector<1x8x128xf32>
    %36 = arith.mulf %34, %35 : vector<1x8x128xf32>
    %cst_16 = arith.constant dense<0.000000e+00> : vector<1x128xf32>
    %37 = vector.multi_reduction <add>, %36, %cst_16 [1] : vector<1x8x128xf32> to vector<1x128xf32>
    %c0_17 = arith.constant 0 : index
    %c0_18 = arith.constant 0 : index
    %38 = vector.load %arg6[%c0_17, %c0_18] : memref<1x128xf32, #tpu.memory_space<vmem>>, vector<1x128xf32>
    %39 = arith.addf %37, %38 : vector<1x128xf32>
    %40 = vector.shape_cast %39 : vector<1x128xf32> to vector<1x1x128xf32>
    %c0_19 = arith.constant 0 : index
    %c0_20 = arith.constant 0 : index
    %c0_21 = arith.constant 0 : index
    %41 = vector.load %arg7[%c0_19, %c0_20, %c0_21] : memref<1x1x128xf32, #tpu.memory_space<vmem>>, vector<1x1x128xf32>
    tpu.vector_store %arg7[%c0_19, %c0_20, %c0_21], %40 {strides = array<i32>} : memref<1x1x128xf32, #tpu.memory_space<vmem>>, vector<1x1x128xf32>,
    return
  }
  func.func @transform_0(%arg0: i32) -> (i32, i32) {
    %c0_i32 = arith.constant 0 : i32
    %c0_i32_0 = arith.constant 0 : i32
    return %arg0, %c0_i32 : i32, i32
  }
  func.func @transform_1(%arg0: i32) -> (i32, i32) {
    %c0_i32 = arith.constant 0 : i32
    %c0_i32_0 = arith.constant 0 : i32
    return %arg0, %c0_i32 : i32, i32
  }
  func.func @transform_2(%arg0: i32) -> (i32, i32) {
    %c0_i32 = arith.constant 0 : i32
    %c0_i32_0 = arith.constant 0 : i32
    %c0_i32_1 = arith.constant 0 : i32
    return %c0_i32, %c0_i32_0 : i32, i32
  }
  func.func @transform_3(%arg0: i32) -> (i32, i32) {
    %c0_i32 = arith.constant 0 : i32
    %c0_i32_0 = arith.constant 0 : i32
    %c0_i32_1 = arith.constant 0 : i32
    return %c0_i32, %c0_i32_0 : i32, i32
  }
  func.func @transform_4(%arg0: i32) -> (i32, i32) {
    %c0_i32 = arith.constant 0 : i32
    %c0_i32_0 = arith.constant 0 : i32
    %c0_i32_1 = arith.constant 0 : i32
    return %c0_i32, %c0_i32_0 : i32, i32
  }
  func.func @transform_5(%arg0: i32) -> (i32, i32) {
    %c0_i32 = arith.constant 0 : i32
    %c0_i32_0 = arith.constant 0 : i32
    %c0_i32_1 = arith.constant 0 : i32
    return %c0_i32, %c0_i32_0 : i32, i32
  }
  func.func @transform_6(%arg0: i32) -> (i32, i32, i32) {
    %c0_i32 = arith.constant 0 : i32
    %c0_i32_0 = arith.constant 0 : i32
    %c0_i32_1 = arith.constant 0 : i32
    return %arg0, %c0_i32, %c0_i32_0 : i32, i32, i32
  }
}

</mosaic_0001>

<llo_original>
// kernel: context_attention.1
$region0: #{context_attention.1}
  #allocation0 [shape = 'u32[]', space=smem, size = 0x4, offset = 0x4, fixed_abs, tag = 'smem constant byte address 0x4 - core index']
  #allocation1 [shape = 'u32[144,128]{1,0:T(1,128)}', space=vmem, size = 0x12000, scoped, tag = 'internal scratch']
  %s0 = inlined_call_operand.vmem [shape: bf16[16,32], index: 0, kind: input, shape index: {}]
  %s1 = inlined_call_operand.vmem [shape: bf16[16,64], index: 1, kind: input, shape index: {}]
  %s2 = inlined_call_operand.vmem [shape: bf16[32,32], index: 2, kind: input, shape index: {}]
  %s3 = inlined_call_operand.vmem [shape: bf16[64,160], index: 3, kind: input, shape index: {}]
  %s4 = inlined_call_operand.vmem [shape: bf16[32,128], index: 4, kind: input, shape index: {}]
  %s5 = inlined_call_operand.vmem [shape: f32[1,128], index: 5, kind: input, shape index: {}]
  %s6 = inlined_call_operand.vmem [shape: f32[2,1,128], index: 6, kind: output, shape index: {}]
  %s7 = sld [smem:[#allocation0]]
  $region57: #{context_attention.1} parent=0
    _
  %s9 = ssub.s32 1, %s7
  %s10 = scalar_select 0, %s9, %s7
  loop: start=0, step=1, limit=4
  $region2: #{context_attention.1} parent=0 // loop_pre_header
    _
  $region3: #{context_attention.1} parent=0 // loop_header
    %s12 = sphi 0, %s16
    %p13 = scmp.ge.s32.totalorder %s12, 4
    %s22 = sphi 0, %s24
    %s25 = sphi 0, %s22
    %s26 = sphi 0, %s25
    %s42 = sphi 0, %s26
    %s48 = sphi 0, %s50
    %s51 = sphi 0, %s48
    %s52 = sphi 0, %s51
    %s68 = sphi 0, %s52
    %s72 = sphi 0, %s72
    %s74 = sphi 0, %s72
    %s75 = sphi 0, %s74
    %s89 = sphi 0, %s75
    %s93 = sphi 0, %s93
    %s95 = sphi 0, %s93
    %s96 = sphi 0, %s95
    %s110 = sphi 0, %s96
    %s114 = sphi 0, %s114
    %s116 = sphi 0, %s114
    %s117 = sphi 0, %s116
    %s131 = sphi 0, %s117
    %s135 = sphi 0, %s135
    %s137 = sphi 0, %s135
    %s138 = sphi 0, %s137
    %s152 = sphi 0, %s138
    %s158 = sphi 0, %s160
    %s161 = sphi 0, %s158
    %s162 = sphi 0, %s161
    %s178 = sphi 0, %s162
  $region4: #{context_attention.1} parent=0 // loop_header_branch
    %15 = sbr.rel (%p13) target = $region8
  $region5: #{context_attention.1} parent=0 // loop_body
    %s17 = ssub.s32 %s12, 1
    %s18 = ssub.s32 %s12, 2
    %s19 = sadd.s32 %s12, 1
    %s20 = ssub.s32 %s12, %s19
    %p21 = scmp.eq.s32.totalorder %s20, 0
    %s23 = sadd.s32 %s22, 1
    %s24 = scalar_select %p21, %s22, %s23
    %p27 = pneg %p21
    %p28 = scmp.eq.s32.totalorder %s12, 1
    %p29 = por %p27, %p28
    %p30 = scmp.ne.s32.totalorder %s22, %s25
    %p31 = scmp.eq.s32.totalorder %s12, 0
    %p32 = por %p30, %p31
    %p33 = scmp.ne.s32.totalorder %s22, %s25
    %p34 = scmp.eq.s32.totalorder %s17, 1
    %p35 = por %p33, %p34
    %p36 = scmp.ne.s32.totalorder %s25, %s26
    %p37 = scmp.eq.s32.totalorder %s17, 0
    %p38 = por %p36, %p37
    %p39 = scmp.ne.s32.totalorder %s25, %s26
    %p40 = scmp.eq.s32.totalorder %s18, 1
    %p41 = por %p39, %p40
    %p43 = scmp.ne.s32.totalorder %s26, %s42
    %p44 = scmp.eq.s32.totalorder %s18, 0
    %p45 = por %p43, %p44
    %s46 = ssub.s32 %s12, %s19
    %p47 = scmp.eq.s32.totalorder %s46, 0
    %s49 = sadd.s32 %s48, 1
    %s50 = scalar_select %p47, %s48, %s49
    %p53 = pneg %p47
    %p54 = scmp.eq.s32.totalorder %s12, 1
    %p55 = por %p53, %p54
    %p56 = scmp.ne.s32.totalorder %s48, %s51
    %p57 = scmp.eq.s32.totalorder %s12, 0
    %p58 = por %p56, %p57
    %p59 = scmp.ne.s32.totalorder %s48, %s51
    %p60 = scmp.eq.s32.totalorder %s17, 1
    %p61 = por %p59, %p60
    %p62 = scmp.ne.s32.totalorder %s51, %s52
    %p63 = scmp.eq.s32.totalorder %s17, 0
    %p64 = por %p62, %p63
    %p65 = scmp.ne.s32.totalorder %s51, %s52
    %p66 = scmp.eq.s32.totalorder %s18, 1
    %p67 = por %p65, %p66
    %p69 = scmp.ne.s32.totalorder %s52, %s68
    %p70 = scmp.eq.s32.totalorder %s18, 0
    %p71 = por %p69, %p70
    %s73 = sadd.s32 %s72, 1
    %p76 = scmp.eq.s32.totalorder %s12, 1
    %p77 = scmp.ne.s32.totalorder %s72, %s74
    %p78 = scmp.eq.s32.totalorder %s12, 0
    %p79 = por %p77, %p78
    %p80 = scmp.ne.s32.totalorder %s72, %s74
    %p81 = scmp.eq.s32.totalorder %s17, 1
    %p82 = por %p80, %p81
    %p83 = scmp.ne.s32.totalorder %s74, %s75
    %p84 = scmp.eq.s32.totalorder %s17, 0
    %p85 = por %p83, %p84
    %p86 = scmp.ne.s32.totalorder %s74, %s75
    %p87 = scmp.eq.s32.totalorder %s18, 1
    %p88 = por %p86, %p87
    %p90 = scmp.ne.s32.totalorder %s75, %s89
    %p91 = scmp.eq.s32.totalorder %s18, 0
    %p92 = por %p90, %p91
    %s94 = sadd.s32 %s93, 1
    %p97 = scmp.eq.s32.totalorder %s12, 1
    %p98 = scmp.ne.s32.totalorder %s93, %s95
    %p99 = scmp.eq.s32.totalorder %s12, 0
    %p100 = por %p98, %p99
    %p101 = scmp.ne.s32.totalorder %s93, %s95
    %p102 = scmp.eq.s32.totalorder %s17, 1
    %p103 = por %p101, %p102
    %p104 = scmp.ne.s32.totalorder %s95, %s96
    %p105 = scmp.eq.s32.totalorder %s17, 0
    %p106 = por %p104, %p105
    %p107 = scmp.ne.s32.totalorder %s95, %s96
    %p108 = scmp.eq.s32.totalorder %s18, 1
    %p109 = por %p107, %p108
    %p111 = scmp.ne.s32.totalorder %s96, %s110
    %p112 = scmp.eq.s32.totalorder %s18, 0
    %p113 = por %p111, %p112
    %s115 = sadd.s32 %s114, 1
    %p118 = scmp.eq.s32.totalorder %s12, 1
    %p119 = scmp.ne.s32.totalorder %s114, %s116
    %p120 = scmp.eq.s32.totalorder %s12, 0
    %p121 = por %p119, %p120
    %p122 = scmp.ne.s32.totalorder %s114, %s116
    %p123 = scmp.eq.s32.totalorder %s17, 1
    %p124 = por %p122, %p123
    %p125 = scmp.ne.s32.totalorder %s116, %s117
    %p126 = scmp.eq.s32.totalorder %s17, 0
    %p127 = por %p125, %p126
    %p128 = scmp.ne.s32.totalorder %s116, %s117
    %p129 = scmp.eq.s32.totalorder %s18, 1
    %p130 = por %p128, %p129
    %p132 = scmp.ne.s32.totalorder %s117, %s131
    %p133 = scmp.eq.s32.totalorder %s18, 0
    %p134 = por %p132, %p133
    %s136 = sadd.s32 %s135, 1
    %p139 = scmp.eq.s32.totalorder %s12, 1
    %p140 = scmp.ne.s32.totalorder %s135, %s137
    %p141 = scmp.eq.s32.totalorder %s12, 0
    %p142 = por %p140, %p141
    %p143 = scmp.ne.s32.totalorder %s135, %s137
    %p144 = scmp.eq.s32.totalorder %s17, 1
    %p145 = por %p143, %p144
    %p146 = scmp.ne.s32.totalorder %s137, %s138
    %p147 = scmp.eq.s32.totalorder %s17, 0
    %p148 = por %p146, %p147
    %p149 = scmp.ne.s32.totalorder %s137, %s138
    %p150 = scmp.eq.s32.totalorder %s18, 1
    %p151 = por %p149, %p150
    %p153 = scmp.ne.s32.totalorder %s138, %s152
    %p154 = scmp.eq.s32.totalorder %s18, 0
    %p155 = por %p153, %p154
    %s156 = ssub.s32 %s12, %s19
    %p157 = scmp.eq.s32.totalorder %s156, 0
    %s159 = sadd.s32 %s158, 1
    %s160 = scalar_select %p157, %s158, %s159
    %p163 = pneg %p157
    %p164 = scmp.eq.s32.totalorder %s12, 1
    %p165 = por %p163, %p164
    %p166 = scmp.ne.s32.totalorder %s158, %s161
    %p167 = scmp.eq.s32.totalorder %s12, 0
    %p168 = por %p166, %p167
    %p169 = scmp.ne.s32.totalorder %s158, %s161
    %p170 = scmp.eq.s32.totalorder %s17, 1
    %p171 = por %p169, %p170
    %p172 = scmp.ne.s32.totalorder %s161, %s162
    %p173 = scmp.eq.s32.totalorder %s17, 0
    %p174 = por %p172, %p173
    %p175 = scmp.ne.s32.totalorder %s161, %s162
    %p176 = scmp.eq.s32.totalorder %s18, 1
    %p177 = por %p175, %p176
    %p179 = scmp.ne.s32.totalorder %s162, %s178
    %p180 = scmp.eq.s32.totalorder %s18, 0
    %p181 = por %p179, %p180
    %p182 = scmp.le.s32.totalorder 1, %s12
    %p183 = scmp.lt.s32.totalorder %s12, 3
    %p184 = pnand %p182, %p183
    %p185 = pneg %p184
    // Predicated region
    $region9: #{context_attention.1} parent=5 // pred_check
      _
    $region10: #{context_attention.1} parent=5 // pred_check_branch
      %187 = sbr.rel (%p184) target = $region12
    $region11: #{context_attention.1} parent=5 // pred_region
      %s188 = ssub.s32 %s12, 1
      // Predicated region
      $region13: #{context_attention.1} parent=11 // pred_check
        %p189 = pneg %p85
      $region14: #{context_attention.1} parent=11 // pred_check_branch
        %191 = sbr.rel (%p189) target = $region16
      $region15: #{context_attention.1} parent=11 // pred_region
        _
      $region16: #{context_attention.1} parent=11 // pred_fallthru
        _
      // Predicated region
      $region17: #{context_attention.1} parent=11 // pred_check
        %p192 = pneg %p106
      $region18: #{context_attention.1} parent=11 // pred_check_branch
        %194 = sbr.rel (%p192) target = $region20
      $region19: #{context_attention.1} parent=11 // pred_region
        _
      $region20: #{context_attention.1} parent=11 // pred_fallthru
        _
      // Predicated region
      $region21: #{context_attention.1} parent=11 // pred_check
        %p195 = pneg %p127
      $region22: #{context_attention.1} parent=11 // pred_check_branch
        %197 = sbr.rel (%p195) target = $region24
      $region23: #{context_attention.1} parent=11 // pred_region
        _
      $region24: #{context_attention.1} parent=11 // pred_fallthru
        _
      // Predicated region
      $region25: #{context_attention.1} parent=11 // pred_check
        %p198 = pneg %p148
      $region26: #{context_attention.1} parent=11 // pred_check_branch
        %200 = sbr.rel (%p198) target = $region28
      $region27: #{context_attention.1} parent=11 // pred_region
        _
      $region28: #{context_attention.1} parent=11 // pred_fallthru
        _
    $region12: #{context_attention.1} parent=5 // pred_fallthru
      _
    %p201 = scmp.lt.s32.totalorder %s12, 2
    // Predicated region
    $region29: #{context_attention.1} parent=5 // pred_check
      %p202 = pneg %p201
    $region30: #{context_attention.1} parent=5 // pred_check_branch
      %204 = sbr.rel (%p202) target = $region32
    $region31: #{context_attention.1} parent=5 // pred_region
      // Predicated region
      $region33: #{context_attention.1} parent=31 // pred_check
        %p205 = pneg %p32
      $region34: #{context_attention.1} parent=31 // pred_check_branch
        %207 = sbr.rel (%p205) target = $region36
      $region35: #{context_attention.1} parent=31 // pred_region
        %p208 = scmp.lt.s32.totalorder %s12, 1
        %s209 = scalar_select %p208, %s12, 1
        %s210 = smul.addr %s209, 4
        %s211 = scalar_lea.vmem %s0, %s210
      $region36: #{context_attention.1} parent=31 // pred_fallthru
        _
      // Predicated region
      $region37: #{context_attention.1} parent=31 // pred_check
        %p212 = pneg %p58
      $region38: #{context_attention.1} parent=31 // pred_check_branch
        %214 = sbr.rel (%p212) target = $region40
      $region39: #{context_attention.1} parent=31 // pred_region
        %p215 = scmp.lt.s32.totalorder %s12, 1
        %s216 = scalar_select %p215, %s12, 1
        %s217 = smul.addr %s216, 4
        %s218 = scalar_lea.vmem %s1, %s217
      $region40: #{context_attention.1} parent=31 // pred_fallthru
        _
    $region32: #{context_attention.1} parent=5 // pred_fallthru
      _
    %p219 = scmp.le.s32.totalorder 1, %s12
    %p220 = scmp.lt.s32.totalorder %s12, 3
    %p221 = pnand %p219, %p220
    %p222 = pneg %p221
    // Predicated region
    $region41: #{context_attention.1} parent=5 // pred_check
      _
    $region42: #{context_attention.1} parent=5 // pred_check_branch
      %224 = sbr.rel (%p221) target = $region44
    $region43: #{context_attention.1} parent=5 // pred_region
      %s225 = ssub.s32 %s12, 1
      %p226 = scmp.lt.s32.totalorder %s17, 1
      %s227 = scalar_select %p226, %s17, 1
      %s228 = smul.addr %s227, 4
      %s229 = scalar_lea.vmem %s0, %s228
      %p230 = pneg %p38
      %p231 = pneg %p35
      %p232 = scmp.lt.s32.totalorder %s17, 1
      %s233 = scalar_select %p232, %s17, 1
      %s234 = smul.addr %s233, 4
      %s235 = scalar_lea.vmem %s1, %s234
      %p236 = pneg %p64
      %p237 = pneg %p61
      %p238 = pneg %p85
      %p239 = pneg %p82
      %p240 = pneg %p106
      %p241 = pneg %p103
      %p242 = pneg %p127
      %p243 = pneg %p124
      %p244 = pneg %p148
      %p245 = pneg %p145
      %p246 = pneg %p174
      %p247 = pneg %p171
      %p248 = scmp.lt.s32.totalorder %s17, 1
      %s249 = scalar_select %p248, %s17, 1
      %s250 = scalar_lea.vmem %s6, %s249
      %p251 = scmp.lt.s32.totalorder %s17, 1
      %s252 = scalar_select %p251, %s17, 1
      %s253 = smul.addr %s252, 4
      %s254 = scalar_lea.vmem %s0, %s253
      %p255 = scmp.lt.s32.totalorder %s17, 1
      %s256 = scalar_select %p255, %s17, 1
      %s257 = smul.addr %s256, 4
      %s258 = scalar_lea.vmem %s1, %s257
      %p259 = scmp.lt.s32.totalorder %s17, 1
      %s260 = scalar_select %p259, %s17, 1
      %s261 = scalar_lea.vmem %s6, %s260
      %v263 = vld [vmem:[%s254] sm:$0xf]
      %v264 = vunpack.c.l.bf16 %v263
      %vm265 = vcmask 261120
      %v266 = vsel %vm265, %v264, 0.0
      %v267 = vrot.slane %v266, 4
      %v268 = vadd.f32 %v266, %v267
      %v269 = vrot.slane %v268, 2
      %v270 = vadd.f32 %v268, %v269
      %v271 = vrot.slane %v270, 1
      %v272 = vadd.f32 %v270, %v271
      %v273 = vmul.f32 %v272, 0.125
      %v274 = vpack.c.bf16 %v273, %v273
      %v275 = vld [vmem:[%s2] sm:$0xf]
      %v276 = vld [vmem:[%s2 + $0x4] sm:$0xf]
      %v277 = vld [vmem:[%s2 + $0x8] sm:$0xf]
      %v278 = vld [vmem:[%s2 + $0xc] sm:$0xf]
      %v283 = vunpack.c.l.b16 %v275
      %v284 = vunpack.c.l.b16 %v276
      %v285 = vunpack.c.l.b16 %v277
      %v286 = vunpack.c.l.b16 %v278
      %v287 = vpack.c.b16 %v284, %v283
      %v288 = vpack.c.b16 %v286, %v285
      %v292 = vsel %vm265, %v274, 0
      %294 = vmatprep.subr.bf16.mxu0 0
      %295 = vmatpush1.bf16.msra.mxu0 %v287
      %296 = vmatprep.subr.bf16.mxu0 0
      %297 = vmatpush1.bf16.msra.mxu0 %v288
      %298 = vmatprep.subr.bf16.mxu0 0
      %299 = vmatpush1.bf16.msra.mxu0 0
      %300 = vmatprep.subr.bf16.mxu0 0
      %301 = vmatpush1.bf16.msra.mxu0 0
      %302 = vmatprep.subr.bf16.mxu0 0
      %303 = vmatpush1.bf16.msra.mxu0 0
      %304 = vmatprep.subr.bf16.mxu0 0
      %305 = vmatpush1.bf16.msra.mxu0 0
      %306 = vmatprep.subr.bf16.mxu0 0
      %307 = vmatpush1.bf16.msra.mxu0 0
      %308 = vmatprep.subr.bf16.mxu0 0
      %309 = vmatpush1.bf16.msra.mxu0 0
      %310 = vmatprep.subr.bf16.mxu0 0
      %311 = vmatpush1.bf16.msra.mxu0 0
      %312 = vmatprep.subr.bf16.mxu0 0
      %313 = vmatpush1.bf16.msra.mxu0 0
      %314 = vmatprep.subr.bf16.mxu0 0
      %315 = vmatpush1.bf16.msra.mxu0 0
      %316 = vmatprep.subr.bf16.mxu0 0
      %317 = vmatpush1.bf16.msra.mxu0 0
      %318 = vmatprep.subr.bf16.mxu0 0
      %319 = vmatpush1.bf16.msra.mxu0 0
      %320 = vmatprep.subr.bf16.mxu0 0
      %321 = vmatpush1.bf16.msra.mxu0 0
      %322 = vmatprep.subr.bf16.mxu0 0
      %323 = vmatpush1.bf16.msra.mxu0 0
      %324 = vmatprep.subr.bf16.mxu0 0
      %325 = vmatpush1.bf16.msra.mxu0 0
      %326 = vmatprep.mubr.bf16.mxu0 0
      %327 = vmatmul.mubr.bf16.gmra.mrb[0].mxu0 %v292
      %v328 = vpop.f32.mrb[0].mxu0
      %v329 = vadd.f32 0.0, %v328
      %v330 = vpop.f32.mrb[0].mxu0
      %v331 = vpop.f32.mrb[0].mxu0
      %v332 = vpop.f32.mrb[0].mxu0
      %333 = vdwg.mxu0
      %v334 = vmul.f32 %v329, 0.35355338
      %v335 = vld [vmem:[%s258] sm:$0xf]
      %v336 = vld [vmem:[%s3] sm:$0xff]
      %v337 = vld [vmem:[%s3 + $0x8] sm:$0xff]
      %v338 = vld [vmem:[%s3 + $0x10] sm:$0xff]
      %v339 = vld [vmem:[%s3 + $0x18] sm:$0xff]
      %v340 = vld [vmem:[%s3 + $0x20] sm:$0xff]
      %v341 = vld [vmem:[%s3 + $0x28] sm:$0xff]
      %v342 = vld [vmem:[%s3 + $0x30] sm:$0xff]
      %v343 = vld [vmem:[%s3 + $0x38] sm:$0xff]
      %v352 = vunpack.c.l.b16 %v336
      %v353 = vunpack.c.h.b16 %v336
      %v354 = vunpack.c.l.b16 %v337
      %v355 = vunpack.c.h.b16 %v337
      %v356 = vunpack.c.l.b16 %v338
      %v357 = vunpack.c.h.b16 %v338
      %v358 = vunpack.c.l.b16 %v339
      %v359 = vunpack.c.h.b16 %v339
      %v360 = vunpack.c.l.b16 %v340
      %v361 = vunpack.c.h.b16 %v340
      %v362 = vunpack.c.l.b16 %v341
      %v363 = vunpack.c.h.b16 %v341
      %v364 = vunpack.c.l.b16 %v342
      %v365 = vunpack.c.h.b16 %v342
      %v366 = vunpack.c.l.b16 %v343
      %v367 = vunpack.c.h.b16 %v343
      %v368 = vpack.c.b16 %v354, %v352
      %v369 = vpack.c.b16 %v355, %v353
      %v370 = vpack.c.b16 %v358, %v356
      %v371 = vpack.c.b16 %v359, %v357
      %v372 = vpack.c.b16 %v362, %v360
      %v373 = vpack.c.b16 %v363, %v361
      %v374 = vpack.c.b16 %v366, %v364
      %v375 = vpack.c.b16 %v367, %v365
      %vm384 = vcmask 523264
      %v386 = vsel %vm384, %v335, 0
      %388 = vmatprep.subr.bf16.mxu0 %v369
      %389 = vmatpush1.bf16.msra.mxu0 %v368
      %390 = vmatprep.subr.bf16.mxu0 %v371
      %391 = vmatpush1.bf16.msra.mxu0 %v370
      %392 = vmatprep.subr.bf16.mxu0 %v373
      %393 = vmatpush1.bf16.msra.mxu0 %v372
      %394 = vmatprep.subr.bf16.mxu0 %v375
      %395 = vmatpush1.bf16.msra.mxu0 %v374
      %396 = vmatprep.subr.bf16.mxu0 0
      %397 = vmatpush1.bf16.msra.mxu0 0
      %398 = vmatprep.subr.bf16.mxu0 0
      %399 = vmatpush1.bf16.msra.mxu0 0
      %400 = vmatprep.subr.bf16.mxu0 0
      %401 = vmatpush1.bf16.msra.mxu0 0
      %402 = vmatprep.subr.bf16.mxu0 0
      %403 = vmatpush1.bf16.msra.mxu0 0
      %404 = vmatprep.subr.bf16.mxu0 0
      %405 = vmatpush1.bf16.msra.mxu0 0
      %406 = vmatprep.subr.bf16.mxu0 0
      %407 = vmatpush1.bf16.msra.mxu0 0
      %408 = vmatprep.subr.bf16.mxu0 0
      %409 = vmatpush1.bf16.msra.mxu0 0
      %410 = vmatprep.subr.bf16.mxu0 0
      %411 = vmatpush1.bf16.msra.mxu0 0
      %412 = vmatprep.subr.bf16.mxu0 0
      %413 = vmatpush1.bf16.msra.mxu0 0
      %414 = vmatprep.subr.bf16.mxu0 0
      %415 = vmatpush1.bf16.msra.mxu0 0
      %416 = vmatprep.subr.bf16.mxu0 0
      %417 = vmatpush1.bf16.msra.mxu0 0
      %418 = vmatprep.subr.bf16.mxu0 0
      %419 = vmatpush1.bf16.msra.mxu0 0
      %420 = vmatprep.mubr.bf16.mxu0 0
      %421 = vmatmul.mubr.bf16.gmra.mrb[0].mxu0 %v386
      %v422 = vpop.f32.mrb[0].mxu0
      %v423 = vadd.f32 0.0, %v422
      %v424 = vpop.f32.mrb[0].mxu0
      %v425 = vadd.f32 0.0, %v424
      %v426 = vpop.f32.mrb[0].mxu0
      %v427 = vpop.f32.mrb[0].mxu0
      %428 = vdwg.mxu0
      %v429 = vlaneseq
      %v430 = vshrl.u32 %v429, 7
      %v431 = vsub.s32 0, %v430
      %v432 = vrot.slane %v334, %v431
      %v433 = vmul.f32 %v425, %v432
      %v434 = vpack.c.bf16 %v433, %v433
      %v435 = vld [vmem:[%s4] sm:$0xf]
      %v436 = vld [vmem:[%s4 + $0x4] sm:$0xf]
      %v437 = vld [vmem:[%s4 + $0x8] sm:$0xf]
      %v438 = vld [vmem:[%s4 + $0xc] sm:$0xf]
      %v443 = vunpack.c.l.b16 %v435
      %v444 = vunpack.c.l.b16 %v436
      %v445 = vunpack.c.l.b16 %v437
      %v446 = vunpack.c.l.b16 %v438
      %v447 = vpack.c.b16 %v444, %v443
      %v448 = vpack.c.b16 %v446, %v445
      %v452 = vsel %vm265, %v434, 0
      %454 = vmatprep.subr.bf16.mxu0 0
      %455 = vmatpush1.bf16.msra.mxu0 %v447
      %456 = vmatprep.subr.bf16.mxu0 0
      %457 = vmatpush1.bf16.msra.mxu0 %v448
      %458 = vmatprep.subr.bf16.mxu0 0
      %459 = vmatpush1.bf16.msra.mxu0 0
      %460 = vmatprep.subr.bf16.mxu0 0
      %461 = vmatpush1.bf16.msra.mxu0 0
      %462 = vmatprep.subr.bf16.mxu0 0
      %463 = vmatpush1.bf16.msra.mxu0 0
      %464 = vmatprep.subr.bf16.mxu0 0
      %465 = vmatpush1.bf16.msra.mxu0 0
      %466 = vmatprep.subr.bf16.mxu0 0
      %467 = vmatpush1.bf16.msra.mxu0 0
      %468 = vmatprep.subr.bf16.mxu0 0
      %469 = vmatpush1.bf16.msra.mxu0 0
      %470 = vmatprep.subr.bf16.mxu0 0
      %471 = vmatpush1.bf16.msra.mxu0 0
      %472 = vmatprep.subr.bf16.mxu0 0
      %473 = vmatpush1.bf16.msra.mxu0 0
      %474 = vmatprep.subr.bf16.mxu0 0
      %475 = vmatpush1.bf16.msra.mxu0 0
      %476 = vmatprep.subr.bf16.mxu0 0
      %477 = vmatpush1.bf16.msra.mxu0 0
      %478 = vmatprep.subr.bf16.mxu0 0
      %479 = vmatpush1.bf16.msra.mxu0 0
      %480 = vmatprep.subr.bf16.mxu0 0
      %481 = vmatpush1.bf16.msra.mxu0 0
      %482 = vmatprep.subr.bf16.mxu0 0
      %483 = vmatpush1.bf16.msra.mxu0 0
      %484 = vmatprep.subr.bf16.mxu0 0
      %485 = vmatpush1.bf16.msra.mxu0 0
      %486 = vmatprep.mubr.bf16.mxu0 0
      %487 = vmatmul.mubr.bf16.gmra.mrb[0].mxu0 %v452
      %v488 = vpop.f32.mrb[0].mxu0
      %v489 = vadd.f32 0.0, %v488
      %v490 = vpop.f32.mrb[0].mxu0
      %v491 = vpop.f32.mrb[0].mxu0
      %v492 = vpop.f32.mrb[0].mxu0
      %493 = vdwg.mxu0
      %v494 = vrot.slane %v489, 4
      %v495 = vmax.f32 %v489, %v494
      %v496 = vrot.slane %v495, 2
      %v497 = vmax.f32 %v495, %v496
      %v498 = vrot.slane %v497, 1
      %v499 = vmax.f32 %v497, %v498
      %v500 = vsub.f32 %v489, %v499
      %v501 = vmul.f32 %v500, 1.442695
      %v502 = vpow.pop %v501
      %v503 = vrot.slane %v502, 4
      %v504 = vadd.f32 %v502, %v503
      %v505 = vrot.slane %v504, 2
      %v506 = vadd.f32 %v504, %v505
      %v507 = vrot.slane %v506, 1
      %v508 = vadd.f32 %v506, %v507
      %v509 = vrcp.pop %v508
      %v510 = vmul.f32 %v502, %v509
      %v511 = vmul.f32 %v510, %v423
      %v512 = vrot.slane %v511, 4
      %v513 = vadd.f32 %v511, %v512
      %v514 = vrot.slane %v513, 2
      %v515 = vadd.f32 %v513, %v514
      %v516 = vrot.slane %v515, 1
      %v517 = vadd.f32 %v515, %v516
      %v518 = vld [vmem:[%s5] sm:$0x1]
      %v519 = vadd.f32 %v517, %v518
      %520 = vst [vmem:[%s261] sm:$0x1] %v519
      %p521 = scmp.lt.s32.totalorder %s17, 1
      %s522 = scalar_select %p521, %s17, 1
      %s523 = scalar_lea.vmem %s6, %s522
      // Predicated region
      $region45: #{context_attention.1} parent=43 // pred_check
        %p524 = pneg %p171
      $region46: #{context_attention.1} parent=43 // pred_check_branch
        %526 = sbr.rel (%p524) target = $region48
      $region47: #{context_attention.1} parent=43 // pred_region
        _
      $region48: #{context_attention.1} parent=43 // pred_fallthru
        _
    $region44: #{context_attention.1} parent=5 // pred_fallthru
      _
    %p527 = scmp.le.s32.totalorder 2, %s12
    // Predicated region
    $region49: #{context_attention.1} parent=5 // pred_check
      %p528 = pneg %p527
    $region50: #{context_attention.1} parent=5 // pred_check_branch
      %530 = sbr.rel (%p528) target = $region52
    $region51: #{context_attention.1} parent=5 // pred_region
      %s531 = ssub.s32 %s12, 2
      // Predicated region
      $region53: #{context_attention.1} parent=51 // pred_check
        %p532 = pneg %p177
      $region54: #{context_attention.1} parent=51 // pred_check_branch
        %534 = sbr.rel (%p532) target = $region56
      $region55: #{context_attention.1} parent=51 // pred_region
        %p535 = scmp.lt.s32.totalorder %s18, 1
        %s536 = scalar_select %p535, %s18, 1
        %s537 = scalar_lea.vmem %s6, %s536
      $region56: #{context_attention.1} parent=51 // pred_fallthru
        _
    $region52: #{context_attention.1} parent=5 // pred_fallthru
      _
  $region6: #{context_attention.1} parent=0 // loop_footer
    %s16 = sadd.s32 1, %s12
  $region7: #{context_attention.1} parent=0 // loop_footer_branch
    %11 = sbr.rel target = $region3
  $region8: #{context_attention.1} parent=0 // loop_exit
    _

</llo_original>
